<compile_context>
chip_gen: v7x
topology: tpu7x:2x2x1
jax: 0.10.0
libtpu: 0.0.40
codegen_flags: <defaults>
</compile_context>

<pallas_src>
import functools

import jax
import jax.numpy as jnp
from jax.experimental import pallas as pl
from jax.experimental.pallas import tpu as pltpu


def _fused_cnn_kernel(*refs, filter_sizes, L, L_pad, TB):
    """Fused conv(all filter sizes) -> ReLU -> max-pool -> concat -> FC.

    refs layout:
      [0]                 emb_ref   (TB, L_ext, E)   matmul dtype (bf16)
      [1 + 2*i]           w_ref_i   (fs_i*E, F)      matmul dtype
      [2 + 2*i]           b_ref_i   (1, F)           f32
      [1 + 2n]            fcw_ref   (n*F, C)         f32
      [2 + 2n]            fcb_ref   (1, C)           f32
      [3 + 2n]            out_ref   (1, TB, C)       f32
      [4 + 2n]            hid_ref   (TB, n*F)        f32 VMEM scratch
    """
    n = len(filter_sizes)
    emb_ref = refs[0]
    conv_refs = refs[1:1 + 2 * n]
    fcw_ref = refs[1 + 2 * n]
    fcb_ref = refs[2 + 2 * n]
    out_ref = refs[3 + 2 * n]
    hid_ref = refs[4 + 2 * n]

    E = emb_ref.shape[-1]
    M = TB * L_pad  # rows fed to the MXU per grid step

    # Time index (position within each padded row) for masking window
    # positions t >= T that fall into the zero padding.
    t_idx = jax.lax.broadcasted_iota(jnp.int32, (M, 1), 0) % L_pad

    for bi, fs in enumerate(filter_sizes):
        w_ref = conv_refs[2 * bi]
        b_ref = conv_refs[2 * bi + 1]
        Fn = w_ref.shape[1]
        T = L - fs + 1  # number of valid conv output positions per row

        # K-packed shifted-window matrix: row (r, t) = [emb[r,t],...,emb[r,t+fs-1]].
        parts = [emb_ref[:, d:d + L_pad, :].reshape(M, E) for d in range(fs)]
        win = parts[0] if fs == 1 else jnp.concatenate(parts, axis=-1)  # (M, fs*E)

        # One MXU matmul per branch: (M, fs*E) @ (fs*E, F) -> f32 accumulate.
        conv = jnp.dot(win, w_ref[...], preferred_element_type=jnp.float32)
        conv = jnp.where(t_idx < T, conv, -jnp.inf)  # mask invalid positions

        # Global max-pool over time per batch row, then bias + ReLU
        # (equivalent to ReLU(conv + b) then max, but on (1,F) not (T,F)).
        b = b_ref[...]
        for r in range(TB):
            pooled = jnp.max(conv[r * L_pad:(r + 1) * L_pad, :], axis=0,
                             keepdims=True)                       # (1, F)
            hid_ref[r:r + 1, bi * Fn:(bi + 1) * Fn] = jnp.maximum(pooled + b, 0.0)

    # Fused FC: hidden (TB, n*F) @ (n*F, C) + bias -> final logits in-kernel.
    hidden = hid_ref[...]
    out = jnp.dot(hidden, fcw_ref[...], preferred_element_type=jnp.float32)
    out_ref[...] = (out + fcb_ref[...]).astype(out_ref.dtype)[None]


def cnn_text_classifier_forward(params, x, *, batch_tile=8,
                                matmul_dtype=jnp.bfloat16):
    filter_sizes = tuple(params["filter_sizes"])
    n = len(filter_sizes)
    max_fs = max(filter_sizes)
    emb_table = params["embedding"]
    B, L = x.shape
    E = emb_table.shape[1]
    Fn = params["convs"][0][0].shape[2]
    C = params["fc_w"].shape[1]

    # TODO(synk): embedding gather stays in plain JAX (data-dependent gather).
    emb = emb_table[x]  # (B, L, E) f32

    # Tiling: TB batch rows per grid step. On v7x keep cdiv(B, TB) >= 2 so both
    # TensorCores get work, and size TB against the 64 MiB VMEM (vs 128 MiB on
    # v5e/v6e) when scaling L/E up.
    TB = max(1, min(batch_tile, B))
    B_pad = ((B + TB - 1) // TB) * TB
    G = B_pad // TB
    L_pad = ((L + 7) // 8) * 8            # window positions per row (mult. of 8)
    L_ext = L_pad + max_fs - 1            # so every shifted slice stays in range

    emb_p = jnp.zeros((B_pad, L_ext, E), matmul_dtype)
    emb_p = emb_p.at[:B, :L, :].set(emb.astype(matmul_dtype))

    conv_args = []
    in_specs = [pl.BlockSpec((TB, L_ext, E), lambda i: (i, 0, 0))]
    for fs, (w, b) in zip(filter_sizes, params["convs"]):
        conv_args += [w.reshape(fs * E, Fn).astype(matmul_dtype),
                      b.astype(jnp.float32)]
        in_specs += [pl.BlockSpec((fs * E, Fn), lambda i: (0, 0)),
                     pl.BlockSpec((1, Fn), lambda i: (0, 0))]
    fcw = params["fc_w"].astype(jnp.float32)
    fcb = params["fc_b"].astype(jnp.float32)
    in_specs += [pl.BlockSpec((n * Fn, C), lambda i: (0, 0)),
                 pl.BlockSpec((1, C), lambda i: (0, 0))]

    kernel = functools.partial(_fused_cnn_kernel, filter_sizes=filter_sizes,
                               L=L, L_pad=L_pad, TB=TB)

    out = pl.pallas_call(
        kernel,
        out_shape=jax.ShapeDtypeStruct((G, TB, C), jnp.float32),
        grid_spec=pltpu.PrefetchScalarGridSpec(
            num_scalar_prefetch=0,
            grid=(G,),
            in_specs=in_specs,
            out_specs=pl.BlockSpec((1, TB, C), lambda i: (i, 0, 0)),
            scratch_shapes=[pltpu.VMEM((TB, n * Fn), jnp.float32)],
        ),
        compiler_params=pltpu.CompilerParams(dimension_semantics=("parallel",)),
    )(emb_p, *conv_args, fcw, fcb)

    return out.reshape(B_pad, C)[:B]


def reference_forward(params, x):
    """Pure-JAX f32 reference matching the PyTorch module."""
    emb = params["embedding"][x]  # (B, L, E)
    L = emb.shape[1]
    pooled = []
    for fs, (w, b) in zip(params["filter_sizes"], params["convs"]):
        T = L - fs + 1
        conv = sum(
            jnp.einsum("ble,ef->blf", emb[:, d:d + T, :], w[d]) for d in range(fs)
        )                                            # (B, T, F)
        conv = jax.nn.relu(conv + b[None])           # bias + ReLU
        pooled.append(jnp.max(conv, axis=1))         # global max-pool over time
    hidden = jnp.concatenate(pooled, axis=1)
    return hidden @ params["fc_w"] + params["fc_b"]


def init_params(key, vocab_size, embedding_dim, num_filters, filter_sizes, num_class):
    n = len(filter_sizes)
    keys = jax.random.split(key, 2 * n + 3)
    params = {
        "embedding": 0.1
        * jax.random.normal(keys[0], (vocab_size, embedding_dim), jnp.float32),
        "filter_sizes": tuple(filter_sizes),
    }
    convs = []
    for i, fs in enumerate(filter_sizes):
        w = 0.1 * jax.random.normal(
            keys[1 + 2 * i], (fs, embedding_dim, num_filters), jnp.float32
        )
        b = 0.1 * jax.random.normal(keys[2 + 2 * i], (1, num_filters), jnp.float32)
        convs.append((w, b))
    params["convs"] = convs
    params["fc_w"] = 0.1 * jax.random.normal(
        keys[2 * n + 1], (num_filters * n, num_class), jnp.float32
    )
    params["fc_b"] = 0.1 * jax.random.normal(keys[2 * n + 2], (1, num_class), jnp.float32)
    return params


if __name__ == "__main__":
    vocab_size, embedding_dim, num_filters = 50, 32, 8
    filter_sizes = (2, 3, 4)
    num_class = 5
    B, L = 2, 8

    key = jax.random.PRNGKey(0)
    pkey, xkey = jax.random.split(key)
    params = init_params(
        pkey, vocab_size, embedding_dim, num_filters, filter_sizes, num_class
    )
    x = jax.random.randint(xkey, (B, L), 0, vocab_size, dtype=jnp.int32)

    out = cnn_text_classifier_forward(params, x)
    out = jax.block_until_ready(out)
    assert out.shape == (B, num_class), out.shape

    ref = reference_forward(params, x)
    assert bool(jnp.allclose(out, ref, atol=3e-2, rtol=3e-2)), (out, ref)
    print("KERNEL_OK")
</pallas_src>

<mosaic_0001>
module attributes {stable_mosaic.version = 11 : i64} {
  func.func @_fused_cnn_kernel(%arg0: i32, %arg1: memref<2x11x32xbf16, #tpu.memory_space<vmem>>, %arg2: memref<64x8xbf16, #tpu.memory_space<vmem>>, %arg3: memref<1x8xf32, #tpu.memory_space<vmem>>, %arg4: memref<96x8xbf16, #tpu.memory_space<vmem>>, %arg5: memref<1x8xf32, #tpu.memory_space<vmem>>, %arg6: memref<128x8xbf16, #tpu.memory_space<vmem>>, %arg7: memref<1x8xf32, #tpu.memory_space<vmem>>, %arg8: memref<24x5xf32, #tpu.memory_space<vmem>>, %arg9: memref<1x5xf32, #tpu.memory_space<vmem>>, %arg10: memref<1x2x5xf32, #tpu.memory_space<vmem>>, %arg11: memref<2x24xf32, #tpu.memory_space<vmem>>) attributes {dimension_semantics = [#tpu.dimension_semantics<parallel>], iteration_bounds = array<i64: 1>, scalar_prefetch = 0 : i64, scratch_operands = 1 : i64, tpu.core_type = #tpu.core_type<tc>, window_params = [{transform_indices = @transform_0, window_bounds = array<i64: 2, 11, 32>}, {pipeline_mode = #tpu.pipeline_mode<synchronous>, transform_indices = @transform_1, window_bounds = array<i64: 64, 8>}, {pipeline_mode = #tpu.pipeline_mode<synchronous>, transform_indices = @transform_2, window_bounds = array<i64: 1, 8>}, {pipeline_mode = #tpu.pipeline_mode<synchronous>, transform_indices = @transform_3, window_bounds = array<i64: 96, 8>}, {pipeline_mode = #tpu.pipeline_mode<synchronous>, transform_indices = @transform_4, window_bounds = array<i64: 1, 8>}, {pipeline_mode = #tpu.pipeline_mode<synchronous>, transform_indices = @transform_5, window_bounds = array<i64: 128, 8>}, {pipeline_mode = #tpu.pipeline_mode<synchronous>, transform_indices = @transform_6, window_bounds = array<i64: 1, 8>}, {pipeline_mode = #tpu.pipeline_mode<synchronous>, transform_indices = @transform_7, window_bounds = array<i64: 24, 5>}, {pipeline_mode = #tpu.pipeline_mode<synchronous>, transform_indices = @transform_8, window_bounds = array<i64: 1, 5>}, {transform_indices = @transform_9, window_bounds = array<i64: 1, 2, 5>}]} {
    %0 = tpu.iota {dimensions = array<i32: 0>} : vector<16x1xi32>
    %c8_i32 = arith.constant 8 : i32
    %c0_i32 = arith.constant 0 : i32
    %1 = arith.cmpi eq, %c8_i32, %c0_i32 : i32
    %c1_i32 = arith.constant 1 : i32
    %2 = arith.select %1, %c1_i32, %c8_i32 : i32
    %3 = vector.broadcast %2 : i32 to vector<16x1xi32>
    %4 = arith.remsi %0, %3 : vector<16x1xi32>
    %c0_i32_0 = arith.constant 0 : i32
    %5 = vector.broadcast %c0_i32_0 : i32 to vector<16x1xi32>
    %6 = arith.cmpi ne, %4, %5 : vector<16x1xi32>
    %c0_i32_1 = arith.constant 0 : i32
    %7 = vector.broadcast %c0_i32_1 : i32 to vector<16x1xi32>
    %8 = arith.cmpi slt, %4, %7 : vector<16x1xi32>
    %c0_i32_2 = arith.constant 0 : i32
    %9 = arith.cmpi slt, %2, %c0_i32_2 : i32
    %10 = vector.broadcast %9 : i1 to vector<16x1xi1>
    %11 = vector.broadcast %10 : vector<16x1xi1> to vector<16x1xi1>
    %12 = arith.xori %8, %11 : vector<16x1xi1>
    %13 = arith.andi %12, %6 : vector<16x1xi1>
    %14 = vector.broadcast %2 : i32 to vector<16x1xi32>
    %15 = arith.addi %4, %14 : vector<16x1xi32>
    %16 = arith.select %13, %15, %4 : vector<16x1xi1>, vector<16x1xi32>
    %c0 = arith.constant 0 : index
    %c0_3 = arith.constant 0 : index
    %c0_4 = arith.constant 0 : index
    %17 = vector.load %arg1[%c0, %c0_3, %c0_4] : memref<2x11x32xbf16, #tpu.memory_space<vmem>>, vector<2x8x32xbf16>
    %18 = vector.shape_cast %17 : vector<2x8x32xbf16> to vector<16x32xbf16>
    %c0_5 = arith.constant 0 : index
    %c1 = arith.constant 1 : index
    %c0_6 = arith.constant 0 : index
    %19 = vector.load %arg1[%c0_5, %c1, %c0_6] : memref<2x11x32xbf16, #tpu.memory_space<vmem>>, vector<2x8x32xbf16>
    %20 = vector.shape_cast %19 : vector<2x8x32xbf16> to vector<16x32xbf16>
    %21 = tpu.concatenate %18, %20 in 1 : vector<16x32xbf16>, vector<16x32xbf16> -> vector<16x64xbf16>
    %c0_7 = arith.constant 0 : index
    %c0_8 = arith.constant 0 : index
    %22 = vector.load %arg2[%c0_7, %c0_8] : memref<64x8xbf16, #tpu.memory_space<vmem>>, vector<64x8xbf16>
    %cst = arith.constant dense<0.000000e+00> : vector<16x8xf32>
    %23 = tpu.matmul %21, %22, %cst {dimension_numbers = #tpu.dot_dimension_numbers<[1], [0], [0], [1], [0, 0, 1, 1], [], []>} : vector<16x64xbf16>, vector<64x8xbf16>, vector<16x8xf32> -> vector<16x8xf32>
    %c7_i32 = arith.constant 7 : i32
    %24 = vector.broadcast %c7_i32 : i32 to vector<16x1xi32>
    %25 = arith.cmpi slt, %16, %24 : vector<16x1xi32>
    %cst_9 = arith.constant 0xFF800000 : f32
    %26 = vector.shape_cast %25 : vector<16x1xi1> to vector<16x1xi1>
    %27 = vector.broadcast %26 : vector<16x1xi1> to vector<16x8xi1>
    %28 = vector.broadcast %cst_9 : f32 to vector<16x8xf32>
    %29 = arith.select %27, %23, %28 : vector<16x8xi1>, vector<16x8xf32>
    %c0_10 = arith.constant 0 : index
    %c0_11 = arith.constant 0 : index
    %30 = vector.load %arg3[%c0_10, %c0_11] : memref<1x8xf32, #tpu.memory_space<vmem>>, vector<1x8xf32>
    %31 = vector.extract_strided_slice %29 {offsets = [0, 0], sizes = [8, 8], strides = [1, 1]} : vector<16x8xf32> to vector<8x8xf32>
    %cst_12 = arith.constant dense<0xFF800000> : vector<8xf32>
    %32 = vector.multi_reduction <maximumf>, %31, %cst_12 [0] : vector<8x8xf32> to vector<8xf32>
    %33 = vector.shape_cast %32 : vector<8xf32> to vector<1x8xf32>
    %34 = arith.addf %33, %30 : vector<1x8xf32>
    %cst_13 = arith.constant 0.000000e+00 : f32
    %35 = vector.broadcast %cst_13 : f32 to vector<1x8xf32>
    %36 = arith.maximumf %34, %35 : vector<1x8xf32>
    %c0_14 = arith.constant 0 : index
    %c0_15 = arith.constant 0 : index
    %37 = vector.load %arg11[%c0_14, %c0_15] : memref<2x24xf32, #tpu.memory_space<vmem>>, vector<1x8xf32>
    tpu.vector_store %arg11[%c0_14, %c0_15], %36 {strides = array<i32>} : memref<2x24xf32, #tpu.memory_space<vmem>>, vector<1x8xf32>,
    %38 = vector.extract_strided_slice %29 {offsets = [8, 0], sizes = [8, 8], strides = [1, 1]} : vector<16x8xf32> to vector<8x8xf32>
    %cst_16 = arith.constant dense<0xFF800000> : vector<8xf32>
    %39 = vector.multi_reduction <maximumf>, %38, %cst_16 [0] : vector<8x8xf32> to vector<8xf32>
    %40 = vector.shape_cast %39 : vector<8xf32> to vector<1x8xf32>
    %41 = arith.addf %40, %30 : vector<1x8xf32>
    %cst_17 = arith.constant 0.000000e+00 : f32
    %42 = vector.broadcast %cst_17 : f32 to vector<1x8xf32>
    %43 = arith.maximumf %41, %42 : vector<1x8xf32>
    %c1_18 = arith.constant 1 : index
    %c0_19 = arith.constant 0 : index
    %44 = vector.load %arg11[%c1_18, %c0_19] : memref<2x24xf32, #tpu.memory_space<vmem>>, vector<1x8xf32>
    tpu.vector_store %arg11[%c1_18, %c0_19], %43 {strides = array<i32>} : memref<2x24xf32, #tpu.memory_space<vmem>>, vector<1x8xf32>,
    %c0_20 = arith.constant 0 : index
    %c0_21 = arith.constant 0 : index
    %c0_22 = arith.constant 0 : index
    %45 = vector.load %arg1[%c0_20, %c0_21, %c0_22] : memref<2x11x32xbf16, #tpu.memory_space<vmem>>, vector<2x8x32xbf16>
    %46 = vector.shape_cast %45 : vector<2x8x32xbf16> to vector<16x32xbf16>
    %c0_23 = arith.constant 0 : index
    %c1_24 = arith.constant 1 : index
    %c0_25 = arith.constant 0 : index
    %47 = vector.load %arg1[%c0_23, %c1_24, %c0_25] : memref<2x11x32xbf16, #tpu.memory_space<vmem>>, vector<2x8x32xbf16>
    %48 = vector.shape_cast %47 : vector<2x8x32xbf16> to vector<16x32xbf16>
    %c0_26 = arith.constant 0 : index
    %c2 = arith.constant 2 : index
    %c0_27 = arith.constant 0 : index
    %49 = vector.load %arg1[%c0_26, %c2, %c0_27] : memref<2x11x32xbf16, #tpu.memory_space<vmem>>, vector<2x8x32xbf16>
    %50 = vector.shape_cast %49 : vector<2x8x32xbf16> to vector<16x32xbf16>
    %51 = tpu.concatenate %46, %48, %50 in 1 : vector<16x32xbf16>, vector<16x32xbf16>, vector<16x32xbf16> -> vector<16x96xbf16>
    %c0_28 = arith.constant 0 : index
    %c0_29 = arith.constant 0 : index
    %52 = vector.load %arg4[%c0_28, %c0_29] : memref<96x8xbf16, #tpu.memory_space<vmem>>, vector<96x8xbf16>
    %cst_30 = arith.constant dense<0.000000e+00> : vector<16x8xf32>
    %53 = tpu.matmul %51, %52, %cst_30 {dimension_numbers = #tpu.dot_dimension_numbers<[1], [0], [0], [1], [0, 0, 1, 1], [], []>} : vector<16x96xbf16>, vector<96x8xbf16>, vector<16x8xf32> -> vector<16x8xf32>
    %c6_i32 = arith.constant 6 : i32
    %54 = vector.broadcast %c6_i32 : i32 to vector<16x1xi32>
    %55 = arith.cmpi slt, %16, %54 : vector<16x1xi32>
    %cst_31 = arith.constant 0xFF800000 : f32
    %56 = vector.shape_cast %55 : vector<16x1xi1> to vector<16x1xi1>
    %57 = vector.broadcast %56 : vector<16x1xi1> to vector<16x8xi1>
    %58 = vector.broadcast %cst_31 : f32 to vector<16x8xf32>
    %59 = arith.select %57, %53, %58 : vector<16x8xi1>, vector<16x8xf32>
    %c0_32 = arith.constant 0 : index
    %c0_33 = arith.constant 0 : index
    %60 = vector.load %arg5[%c0_32, %c0_33] : memref<1x8xf32, #tpu.memory_space<vmem>>, vector<1x8xf32>
    %61 = vector.extract_strided_slice %59 {offsets = [0, 0], sizes = [8, 8], strides = [1, 1]} : vector<16x8xf32> to vector<8x8xf32>
    %cst_34 = arith.constant dense<0xFF800000> : vector<8xf32>
    %62 = vector.multi_reduction <maximumf>, %61, %cst_34 [0] : vector<8x8xf32> to vector<8xf32>
    %63 = vector.shape_cast %62 : vector<8xf32> to vector<1x8xf32>
    %64 = arith.addf %63, %60 : vector<1x8xf32>
    %cst_35 = arith.constant 0.000000e+00 : f32
    %65 = vector.broadcast %cst_35 : f32 to vector<1x8xf32>
    %66 = arith.maximumf %64, %65 : vector<1x8xf32>
    %c0_36 = arith.constant 0 : index
    %c8 = arith.constant 8 : index
    %67 = vector.load %arg11[%c0_36, %c8] : memref<2x24xf32, #tpu.memory_space<vmem>>, vector<1x8xf32>
    tpu.vector_store %arg11[%c0_36, %c8], %66 {strides = array<i32>} : memref<2x24xf32, #tpu.memory_space<vmem>>, vector<1x8xf32>,
    %68 = vector.extract_strided_slice %59 {offsets = [8, 0], sizes = [8, 8], strides = [1, 1]} : vector<16x8xf32> to vector<8x8xf32>
    %cst_37 = arith.constant dense<0xFF800000> : vector<8xf32>
    %69 = vector.multi_reduction <maximumf>, %68, %cst_37 [0] : vector<8x8xf32> to vector<8xf32>
    %70 = vector.shape_cast %69 : vector<8xf32> to vector<1x8xf32>
    %71 = arith.addf %70, %60 : vector<1x8xf32>
    %cst_38 = arith.constant 0.000000e+00 : f32
    %72 = vector.broadcast %cst_38 : f32 to vector<1x8xf32>
    %73 = arith.maximumf %71, %72 : vector<1x8xf32>
    %c1_39 = arith.constant 1 : index
    %c8_40 = arith.constant 8 : index
    %74 = vector.load %arg11[%c1_39, %c8_40] : memref<2x24xf32, #tpu.memory_space<vmem>>, vector<1x8xf32>
    tpu.vector_store %arg11[%c1_39, %c8_40], %73 {strides = array<i32>} : memref<2x24xf32, #tpu.memory_space<vmem>>, vector<1x8xf32>,
    %c0_41 = arith.constant 0 : index
    %c0_42 = arith.constant 0 : index
    %c0_43 = arith.constant 0 : index
    %75 = vector.load %arg1[%c0_41, %c0_42, %c0_43] : memref<2x11x32xbf16, #tpu.memory_space<vmem>>, vector<2x8x32xbf16>
    %76 = vector.shape_cast %75 : vector<2x8x32xbf16> to vector<16x32xbf16>
    %c0_44 = arith.constant 0 : index
    %c1_45 = arith.constant 1 : index
    %c0_46 = arith.constant 0 : index
    %77 = vector.load %arg1[%c0_44, %c1_45, %c0_46] : memref<2x11x32xbf16, #tpu.memory_space<vmem>>, vector<2x8x32xbf16>
    %78 = vector.shape_cast %77 : vector<2x8x32xbf16> to vector<16x32xbf16>
    %c0_47 = arith.constant 0 : index
    %c2_48 = arith.constant 2 : index
    %c0_49 = arith.constant 0 : index
    %79 = vector.load %arg1[%c0_47, %c2_48, %c0_49] : memref<2x11x32xbf16, #tpu.memory_space<vmem>>, vector<2x8x32xbf16>
    %80 = vector.shape_cast %79 : vector<2x8x32xbf16> to vector<16x32xbf16>
    %c0_50 = arith.constant 0 : index
    %c3 = arith.constant 3 : index
    %c0_51 = arith.constant 0 : index
    %81 = vector.load %arg1[%c0_50, %c3, %c0_51] : memref<2x11x32xbf16, #tpu.memory_space<vmem>>, vector<2x8x32xbf16>
    %82 = vector.shape_cast %81 : vector<2x8x32xbf16> to vector<16x32xbf16>
    %83 = tpu.concatenate %76, %78, %80, %82 in 1 : vector<16x32xbf16>, vector<16x32xbf16>, vector<16x32xbf16>, vector<16x32xbf16> -> vector<16x128xbf16>
    %c0_52 = arith.constant 0 : index
    %c0_53 = arith.constant 0 : index
    %84 = vector.load %arg6[%c0_52, %c0_53] : memref<128x8xbf16, #tpu.memory_space<vmem>>, vector<128x8xbf16>
    %cst_54 = arith.constant dense<0.000000e+00> : vector<16x8xf32>
    %85 = tpu.matmul %83, %84, %cst_54 {dimension_numbers = #tpu.dot_dimension_numbers<[1], [0], [0], [1], [0, 0, 1, 1], [], []>} : vector<16x128xbf16>, vector<128x8xbf16>, vector<16x8xf32> -> vector<16x8xf32>
    %c5_i32 = arith.constant 5 : i32
    %86 = vector.broadcast %c5_i32 : i32 to vector<16x1xi32>
    %87 = arith.cmpi slt, %16, %86 : vector<16x1xi32>
    %cst_55 = arith.constant 0xFF800000 : f32
    %88 = vector.shape_cast %87 : vector<16x1xi1> to vector<16x1xi1>
    %89 = vector.broadcast %88 : vector<16x1xi1> to vector<16x8xi1>
    %90 = vector.broadcast %cst_55 : f32 to vector<16x8xf32>
    %91 = arith.select %89, %85, %90 : vector<16x8xi1>, vector<16x8xf32>
    %c0_56 = arith.constant 0 : index
    %c0_57 = arith.constant 0 : index
    %92 = vector.load %arg7[%c0_56, %c0_57] : memref<1x8xf32, #tpu.memory_space<vmem>>, vector<1x8xf32>
    %93 = vector.extract_strided_slice %91 {offsets = [0, 0], sizes = [8, 8], strides = [1, 1]} : vector<16x8xf32> to vector<8x8xf32>
    %cst_58 = arith.constant dense<0xFF800000> : vector<8xf32>
    %94 = vector.multi_reduction <maximumf>, %93, %cst_58 [0] : vector<8x8xf32> to vector<8xf32>
    %95 = vector.shape_cast %94 : vector<8xf32> to vector<1x8xf32>
    %96 = arith.addf %95, %92 : vector<1x8xf32>
    %cst_59 = arith.constant 0.000000e+00 : f32
    %97 = vector.broadcast %cst_59 : f32 to vector<1x8xf32>
    %98 = arith.maximumf %96, %97 : vector<1x8xf32>
    %c0_60 = arith.constant 0 : index
    %c16 = arith.constant 16 : index
    %99 = vector.load %arg11[%c0_60, %c16] : memref<2x24xf32, #tpu.memory_space<vmem>>, vector<1x8xf32>
    tpu.vector_store %arg11[%c0_60, %c16], %98 {strides = array<i32>} : memref<2x24xf32, #tpu.memory_space<vmem>>, vector<1x8xf32>,
    %100 = vector.extract_strided_slice %91 {offsets = [8, 0], sizes = [8, 8], strides = [1, 1]} : vector<16x8xf32> to vector<8x8xf32>
    %cst_61 = arith.constant dense<0xFF800000> : vector<8xf32>
    %101 = vector.multi_reduction <maximumf>, %100, %cst_61 [0] : vector<8x8xf32> to vector<8xf32>
    %102 = vector.shape_cast %101 : vector<8xf32> to vector<1x8xf32>
    %103 = arith.addf %102, %92 : vector<1x8xf32>
    %cst_62 = arith.constant 0.000000e+00 : f32
    %104 = vector.broadcast %cst_62 : f32 to vector<1x8xf32>
    %105 = arith.maximumf %103, %104 : vector<1x8xf32>
    %c1_63 = arith.constant 1 : index
    %c16_64 = arith.constant 16 : index
    %106 = vector.load %arg11[%c1_63, %c16_64] : memref<2x24xf32, #tpu.memory_space<vmem>>, vector<1x8xf32>
    tpu.vector_store %arg11[%c1_63, %c16_64], %105 {strides = array<i32>} : memref<2x24xf32, #tpu.memory_space<vmem>>, vector<1x8xf32>,
    %c0_65 = arith.constant 0 : index
    %c0_66 = arith.constant 0 : index
    %107 = vector.load %arg11[%c0_65, %c0_66] : memref<2x24xf32, #tpu.memory_space<vmem>>, vector<2x24xf32>
    %c0_67 = arith.constant 0 : index
    %c0_68 = arith.constant 0 : index
    %108 = vector.load %arg8[%c0_67, %c0_68] : memref<24x5xf32, #tpu.memory_space<vmem>>, vector<24x5xf32>
    %cst_69 = arith.constant dense<0.000000e+00> : vector<2x5xf32>
    %109 = tpu.matmul %107, %108, %cst_69 {dimension_numbers = #tpu.dot_dimension_numbers<[1], [0], [0], [1], [0, 0, 1, 1], [], []>} : vector<2x24xf32>, vector<24x5xf32>, vector<2x5xf32> -> vector<2x5xf32>
    %c0_70 = arith.constant 0 : index
    %c0_71 = arith.constant 0 : index
    %110 = vector.load %arg9[%c0_70, %c0_71] : memref<1x5xf32, #tpu.memory_space<vmem>>, vector<1x5xf32>
    %111 = vector.broadcast %110 : vector<1x5xf32> to vector<2x5xf32>
    %112 = arith.addf %109, %111 : vector<2x5xf32>
    %113 = vector.shape_cast %112 : vector<2x5xf32> to vector<1x2x5xf32>
    %c0_72 = arith.constant 0 : index
    %c0_73 = arith.constant 0 : index
    %c0_74 = arith.constant 0 : index
    %114 = vector.load %arg10[%c0_72, %c0_73, %c0_74] : memref<1x2x5xf32, #tpu.memory_space<vmem>>, vector<1x2x5xf32>
    tpu.vector_store %arg10[%c0_72, %c0_73, %c0_74], %113 {strides = array<i32>} : memref<1x2x5xf32, #tpu.memory_space<vmem>>, vector<1x2x5xf32>,
    return
  }
  func.func @transform_0(%arg0: i32) -> (i32, i32, i32) {
    %c0_i32 = arith.constant 0 : i32
    %c0_i32_0 = arith.constant 0 : i32
    %c0_i32_1 = arith.constant 0 : i32
    return %arg0, %c0_i32, %c0_i32_0 : i32, i32, i32
  }
  func.func @transform_1(%arg0: i32) -> (i32, i32) {
    %c0_i32 = arith.constant 0 : i32
    %c0_i32_0 = arith.constant 0 : i32
    %c0_i32_1 = arith.constant 0 : i32
    return %c0_i32, %c0_i32_0 : i32, i32
  }
  func.func @transform_2(%arg0: i32) -> (i32, i32) {
    %c0_i32 = arith.constant 0 : i32
    %c0_i32_0 = arith.constant 0 : i32
    %c0_i32_1 = arith.constant 0 : i32
    return %c0_i32, %c0_i32_0 : i32, i32
  }
  func.func @transform_3(%arg0: i32) -> (i32, i32) {
    %c0_i32 = arith.constant 0 : i32
    %c0_i32_0 = arith.constant 0 : i32
    %c0_i32_1 = arith.constant 0 : i32
    return %c0_i32, %c0_i32_0 : i32, i32
  }
  func.func @transform_4(%arg0: i32) -> (i32, i32) {
    %c0_i32 = arith.constant 0 : i32
    %c0_i32_0 = arith.constant 0 : i32
    %c0_i32_1 = arith.constant 0 : i32
    return %c0_i32, %c0_i32_0 : i32, i32
  }
  func.func @transform_5(%arg0: i32) -> (i32, i32) {
    %c0_i32 = arith.constant 0 : i32
    %c0_i32_0 = arith.constant 0 : i32
    %c0_i32_1 = arith.constant 0 : i32
    return %c0_i32, %c0_i32_0 : i32, i32
  }
  func.func @transform_6(%arg0: i32) -> (i32, i32) {
    %c0_i32 = arith.constant 0 : i32
    %c0_i32_0 = arith.constant 0 : i32
    %c0_i32_1 = arith.constant 0 : i32
    return %c0_i32, %c0_i32_0 : i32, i32
  }
  func.func @transform_7(%arg0: i32) -> (i32, i32) {
    %c0_i32 = arith.constant 0 : i32
    %c0_i32_0 = arith.constant 0 : i32
    %c0_i32_1 = arith.constant 0 : i32
    return %c0_i32, %c0_i32_0 : i32, i32
  }
  func.func @transform_8(%arg0: i32) -> (i32, i32) {
    %c0_i32 = arith.constant 0 : i32
    %c0_i32_0 = arith.constant 0 : i32
    %c0_i32_1 = arith.constant 0 : i32
    return %c0_i32, %c0_i32_0 : i32, i32
  }
  func.func @transform_9(%arg0: i32) -> (i32, i32, i32) {
    %c0_i32 = arith.constant 0 : i32
    %c0_i32_0 = arith.constant 0 : i32
    %c0_i32_1 = arith.constant 0 : i32
    return %arg0, %c0_i32, %c0_i32_0 : i32, i32, i32
  }
}

</mosaic_0001>

<llo_original>
// kernel: tpu_custom_call.1
$region0: #{tpu_custom_call.1}
  #allocation0 [shape = 'u32[]', space=smem, size = 0x4, offset = 0x4, fixed_abs, tag = 'smem constant byte address 0x4 - core index']
  #allocation1 [shape = 'u32[144,128]{1,0:T(1,128)}', space=vmem, size = 0x12000, scoped, tag = 'internal scratch']
  #allocation2 [shape = 'f32[2,24]{1,0:T(2,128)}', space=vmem, size = 0x400, scoped, tag = 'scratch operand']
  %s0 = inlined_call_operand.vmem [shape: bf16[2,11,32], index: 0, kind: input, shape index: {}]
  %s1 = inlined_call_operand.vmem [shape: bf16[64,8], index: 1, kind: input, shape index: {}]
  %s2 = inlined_call_operand.vmem [shape: f32[1,8], index: 2, kind: input, shape index: {}]
  %s3 = inlined_call_operand.vmem [shape: bf16[96,8], index: 3, kind: input, shape index: {}]
  %s4 = inlined_call_operand.vmem [shape: f32[1,8], index: 4, kind: input, shape index: {}]
  %s5 = inlined_call_operand.vmem [shape: bf16[128,8], index: 5, kind: input, shape index: {}]
  %s6 = inlined_call_operand.vmem [shape: f32[1,8], index: 6, kind: input, shape index: {}]
  %s7 = inlined_call_operand.vmem [shape: f32[24,5], index: 7, kind: input, shape index: {}]
  %s8 = inlined_call_operand.vmem [shape: f32[1,5], index: 8, kind: input, shape index: {}]
  %s9 = inlined_call_operand.hbm [shape: f32[1,2,5], index: 9, kind: output, shape index: {}]
  %s10 = sld [smem:[#allocation0]]
  $region46: #{tpu_custom_call.1} parent=0
    _
  %s12 = ssub.s32 1, %s10
  %s13 = scalar_select 0, %s12, %s10
  $region1: #{tpu_custom_call.1} parent=0
    #allocation3 [shape = 'u8[1024]{0}', space=vmem, size = 0x400, scoped, tag = 'output window, operand 0, single buffered']
    #allocation4 [shape = 's32[1]{0}', space=sflag, size = 0x4, scoped, tag = 'scoped memory for tpu_custom_call.1']
    %14 = vsyncpa [#allocation4], 0
    // Predicated region
    $region2: #{tpu_custom_call.1} parent=1 // pred_check
      _
    $region3: #{tpu_custom_call.1} parent=1 // pred_check_branch
      %16 = sbr.rel (0) target = $region5
    $region4: #{tpu_custom_call.1} parent=1 // pred_region
      _
    $region5: #{tpu_custom_call.1} parent=1 // pred_fallthru
      _
    // Predicated region
    $region6: #{tpu_custom_call.1} parent=1 // pred_check
      _
    $region7: #{tpu_custom_call.1} parent=1 // pred_check_branch
      %18 = sbr.rel (0) target = $region9
    $region8: #{tpu_custom_call.1} parent=1 // pred_region
      _
    $region9: #{tpu_custom_call.1} parent=1 // pred_fallthru
      _
    // Predicated region
    $region10: #{tpu_custom_call.1} parent=1 // pred_check
      _
    $region11: #{tpu_custom_call.1} parent=1 // pred_check_branch
      %20 = sbr.rel (0) target = $region13
    $region12: #{tpu_custom_call.1} parent=1 // pred_region
      _
    $region13: #{tpu_custom_call.1} parent=1 // pred_fallthru
      _
    // Predicated region
    $region14: #{tpu_custom_call.1} parent=1 // pred_check
      _
    $region15: #{tpu_custom_call.1} parent=1 // pred_check_branch
      %22 = sbr.rel (0) target = $region17
    $region16: #{tpu_custom_call.1} parent=1 // pred_region
      _
    $region17: #{tpu_custom_call.1} parent=1 // pred_fallthru
      _
    // Predicated region
    $region18: #{tpu_custom_call.1} parent=1 // pred_check
      _
    $region19: #{tpu_custom_call.1} parent=1 // pred_check_branch
      %24 = sbr.rel (0) target = $region21
    $region20: #{tpu_custom_call.1} parent=1 // pred_region
      _
    $region21: #{tpu_custom_call.1} parent=1 // pred_fallthru
      _
    // Predicated region
    $region22: #{tpu_custom_call.1} parent=1 // pred_check
      _
    $region23: #{tpu_custom_call.1} parent=1 // pred_check_branch
      %26 = sbr.rel (0) target = $region25
    $region24: #{tpu_custom_call.1} parent=1 // pred_region
      _
    $region25: #{tpu_custom_call.1} parent=1 // pred_fallthru
      _
    // Predicated region
    $region26: #{tpu_custom_call.1} parent=1 // pred_check
      _
    $region27: #{tpu_custom_call.1} parent=1 // pred_check_branch
      %28 = sbr.rel (0) target = $region29
    $region28: #{tpu_custom_call.1} parent=1 // pred_region
      _
    $region29: #{tpu_custom_call.1} parent=1 // pred_fallthru
      _
    // Predicated region
    $region30: #{tpu_custom_call.1} parent=1 // pred_check
      _
    $region31: #{tpu_custom_call.1} parent=1 // pred_check_branch
      %30 = sbr.rel (0) target = $region33
    $region32: #{tpu_custom_call.1} parent=1 // pred_region
      _
    $region33: #{tpu_custom_call.1} parent=1 // pred_fallthru
      _
    // Predicated region
    $region34: #{tpu_custom_call.1} parent=1 // pred_check
      _
    $region35: #{tpu_custom_call.1} parent=1 // pred_check_branch
      %32 = sbr.rel (0) target = $region37
    $region36: #{tpu_custom_call.1} parent=1 // pred_region
      _
    $region37: #{tpu_custom_call.1} parent=1 // pred_fallthru
      _
    %v34 = vlaneseq
    %v35 = vshrl.u32 %v34, 7
    %v36 = vadd.s32 %v35, 8
    %vm37 = vcmp.lt.s32.totalorder %v35, 0
    %v38 = vsub.s32 0, %v35
    %v39 = vsel %vm37, %v38, %v35
    %v40 = vshrl.u32 %v39, 3
    %v41 = vand.u32 %v39, 7
    %v42 = vsub.s32 0, %v41
    %v43 = vsel %vm37, %v42, %v41
    %vm44 = vcmp.lt.s32.totalorder %v36, 0
    %v45 = vsub.s32 0, %v36
    %v46 = vsel %vm44, %v45, %v36
    %v47 = vshrl.u32 %v46, 3
    %v48 = vand.u32 %v46, 7
    %v49 = vsub.s32 0, %v48
    %v50 = vsel %vm44, %v49, %v48
    %vm51 = vcmp.ne.s32.totalorder %v43, 0
    %vm52 = vcmp.ne.s32.totalorder %v50, 0
    %vm53 = vcmp.lt.s32.totalorder %v43, 0
    %vm54 = vcmp.lt.s32.totalorder %v50, 0
    %vm55 = vmand %vm53, %vm51
    %vm56 = vmand %vm54, %vm52
    %v57 = vadd.s32 %v43, 8
    %v58 = vadd.s32 %v50, 8
    %v59 = vsel %vm55, %v57, %v43
    %v60 = vsel %vm56, %v58, %v50
    %v61 = vld [vmem:[%s0] sm:$0xf]
    %v62 = vld [vmem:[%s0 + $0x8] sm:$0xf]
    %v63 = vld [vmem:[%s0 + $0x4] sm:$0x1]
    %v64 = vld [vmem:[%s0 + $0xc] sm:$0x1]
    %vm65 = vsmask.f32 3328
    %vm66 = vsmask.f32 7440
    %vm67 = vmor %vm65, %vm66
    %v69 = vshrl.u32 %v61, 16
    %v71 = vrot.slane %v69, 4
    %v72 = vshll.u32 %v61, 16
    %v74 = vrot.slane %v72, 5
    %v75 = vor.u32 %v71, %v74
    %v76 = vrot.slane %v75, 4
    %v78 = vshll.u32 %v63, 16
    %v80 = vrot.slane %v78, 5
    %v81 = vsel %vm67, %v76, %v80
    %v83 = vshrl.u32 %v62, 16
    %v85 = vrot.slane %v83, 4
    %v86 = vshll.u32 %v62, 16
    %v88 = vrot.slane %v86, 5
    %v89 = vor.u32 %v85, %v88
    %v90 = vrot.slane %v89, 4
    %v92 = vshll.u32 %v64, 16
    %v94 = vrot.slane %v92, 5
    %v95 = vsel %vm67, %v90, %v94
    %v98 = vunpack.c.l.b16 %v61
    %v99 = vunpack.c.l.b16 %v62
    %v100 = vpack.c.b16 %v99, %v98
    %v101 = vunpack.c.l.b16 %v81
    %v102 = vunpack.c.l.b16 %v95
    %v103 = vpack.c.b16 %v102, %v101
    %104 = vrot.lane.b32.xlu0 %v103, 32
    %v105 = vpop.permute.xlu0 %104
    %vm106 = vcmask 261120
    %v109 = vsel %vm106, %v100, %v105
    %v110 = vld [vmem:[%s1] sm:$0xf]
    %v111 = vld [vmem:[%s1 + $0x4] sm:$0xf]
    %v112 = vld [vmem:[%s1 + $0x8] sm:$0xf]
    %v113 = vld [vmem:[%s1 + $0xc] sm:$0xf]
    %v114 = vld [vmem:[%s1 + $0x10] sm:$0xf]
    %v115 = vld [vmem:[%s1 + $0x14] sm:$0xf]
    %v116 = vld [vmem:[%s1 + $0x18] sm:$0xf]
    %v117 = vld [vmem:[%s1 + $0x1c] sm:$0xf]
    %v126 = vunpack.c.l.b16 %v110
    %v127 = vunpack.c.l.b16 %v111
    %v128 = vunpack.c.l.b16 %v112
    %v129 = vunpack.c.l.b16 %v113
    %v130 = vunpack.c.l.b16 %v114
    %v131 = vunpack.c.l.b16 %v115
    %v132 = vunpack.c.l.b16 %v116
    %v133 = vunpack.c.l.b16 %v117
    %v134 = vpack.c.b16 %v127, %v126
    %v135 = vpack.c.b16 %v129, %v128
    %v136 = vpack.c.b16 %v131, %v130
    %v137 = vpack.c.b16 %v133, %v132
    %vm142 = vcmask 523264
    %v143 = vsel %vm142, %v109, 0
    %145 = vmatprep.subr.bf16.mxu0 0
    %146 = vmatpush1.bf16.msra.mxu0 %v134
    %147 = vmatprep.subr.bf16.mxu0 0
    %148 = vmatpush1.bf16.msra.mxu0 %v135
    %149 = vmatprep.subr.bf16.mxu0 0
    %150 = vmatpush1.bf16.msra.mxu0 %v136
    %151 = vmatprep.subr.bf16.mxu0 0
    %152 = vmatpush1.bf16.msra.mxu0 %v137
    %153 = vmatprep.subr.bf16.mxu0 0
    %154 = vmatpush1.bf16.msra.mxu0 0
    %155 = vmatprep.subr.bf16.mxu0 0
    %156 = vmatpush1.bf16.msra.mxu0 0
    %157 = vmatprep.subr.bf16.mxu0 0
    %158 = vmatpush1.bf16.msra.mxu0 0
    %159 = vmatprep.subr.bf16.mxu0 0
    %160 = vmatpush1.bf16.msra.mxu0 0
    %161 = vmatprep.subr.bf16.mxu0 0
    %162 = vmatpush1.bf16.msra.mxu0 0
    %163 = vmatprep.subr.bf16.mxu0 0
    %164 = vmatpush1.bf16.msra.mxu0 0
    %165 = vmatprep.subr.bf16.mxu0 0
    %166 = vmatpush1.bf16.msra.mxu0 0
    %167 = vmatprep.subr.bf16.mxu0 0
    %168 = vmatpush1.bf16.msra.mxu0 0
    %169 = vmatprep.subr.bf16.mxu0 0
    %170 = vmatpush1.bf16.msra.mxu0 0
    %171 = vmatprep.subr.bf16.mxu0 0
    %172 = vmatpush1.bf16.msra.mxu0 0
    %173 = vmatprep.subr.bf16.mxu0 0
    %174 = vmatpush1.bf16.msra.mxu0 0
    %175 = vmatprep.subr.bf16.mxu0 0
    %176 = vmatpush1.bf16.msra.mxu0 0
    %177 = vmatprep.mubr.bf16.mxu0 0
    %178 = vmatmul.mubr.bf16.gmra.mrb[0].mxu0 %v143
    %v179 = vpop.f32.mrb[0].mxu0
    %v180 = vadd.f32 0.0, %v179
    %v181 = vpop.f32.mrb[0].mxu0
    %v182 = vpop.f32.mrb[0].mxu0
    %v183 = vadd.f32 0.0, %v182
    %v184 = vpop.f32.mrb[0].mxu0
    %185 = vdwg.mxu0
    %vm186 = vcmp.lt.s32.totalorder %v59, 7
    %vm187 = vcmp.lt.s32.totalorder %v60, 7
    %v188 = vsel %vm186, 1, 0
    %v189 = vsel %vm187, 1, 0
    %vm190 = vcmp.eq.s32.totalorder %v188, 1
    %vm191 = vcmp.eq.s32.totalorder %v189, 1
    %v192 = vsel %vm190, %v180, -inf
    %v193 = vsel %vm191, %v183, -inf
    %v194 = vld [vmem:[%s2] sm:$0x1]
    %vm195 = vcmask 64512
    %v196 = vsel %vm195, %v192, -inf
    %v197 = vrot.slane %v196, 4
    %v198 = vmax.f32 %v196, %v197
    %v199 = vrot.slane %v198, 2
    %v200 = vmax.f32 %v198, %v199
    %v201 = vrot.slane %v200, 1
    %v202 = vmax.f32 %v200, %v201
    %v203 = vadd.f32 %v202, %v194
    %v204 = vmax.f32 %v203, 0.0
    %vm205 = vcmask 57344
    %206 = vst.msk [vmem:[#allocation2] sm:$0x1] %vm205, %v204
    %v207 = vsel %vm195, %v193, -inf
    %v208 = vrot.slane %v207, 4
    %v209 = vmax.f32 %v207, %v208
    %v210 = vrot.slane %v209, 2
    %v211 = vmax.f32 %v209, %v210
    %v212 = vrot.slane %v211, 1
    %v213 = vmax.f32 %v211, %v212
    %v214 = vadd.f32 %v213, %v194
    %v215 = vmax.f32 %v214, 0.0
    %216 = vst.msk [vmem:[#allocation2 + $0x1] sm:$0x1] %vm205, %v215
    %v217 = vld [vmem:[%s0] sm:$0xf]
    %v218 = vld [vmem:[%s0 + $0x8] sm:$0xf]
    %v219 = vld [vmem:[%s0 + $0x4] sm:$0x1]
    %v220 = vld [vmem:[%s0 + $0xc] sm:$0x1]
    %v222 = vshrl.u32 %v217, 16
    %v224 = vrot.slane %v222, 4
    %v225 = vshll.u32 %v217, 16
    %v227 = vrot.slane %v225, 5
    %v228 = vor.u32 %v224, %v227
    %v229 = vrot.slane %v228, 4
    %v231 = vshll.u32 %v219, 16
    %v233 = vrot.slane %v231, 5
    %v234 = vsel %vm67, %v229, %v233
    %v236 = vshrl.u32 %v218, 16
    %v238 = vrot.slane %v236, 4
    %v239 = vshll.u32 %v218, 16
    %v241 = vrot.slane %v239, 5
    %v242 = vor.u32 %v238, %v241
    %v243 = vrot.slane %v242, 4
    %v245 = vshll.u32 %v220, 16
    %v247 = vrot.slane %v245, 5
    %v248 = vsel %vm67, %v243, %v247
    %v249 = vld [vmem:[%s0] sm:$0xe]
    %v250 = vld [vmem:[%s0 + $0x8] sm:$0xe]
    %vm255 = vcmask 1042432
    %vm256 = vcmask 1046532
    %vm257 = vmor %vm255, %vm256
    %v258 = vrot.slane %v249, 5
    %v259 = vrot.slane %v258, 4
    %v260 = vrot.slane %v219, 5
    %v261 = vsel %vm257, %v259, %v260
    %v262 = vrot.slane %v250, 5
    %v263 = vrot.slane %v262, 4
    %v264 = vrot.slane %v220, 5
    %v265 = vsel %vm257, %v263, %v264
    %v268 = vunpack.c.l.b16 %v217
    %v269 = vunpack.c.l.b16 %v218
    %v270 = vpack.c.b16 %v269, %v268
    %v271 = vunpack.c.l.b16 %v234
    %v272 = vunpack.c.l.b16 %v248
    %v273 = vpack.c.b16 %v272, %v271
    %274 = vrot.lane.b32.xlu0 %v273, 32
    %v275 = vpop.permute.xlu0 %274
    %v276 = vunpack.c.l.b16 %v261
    %v277 = vunpack.c.l.b16 %v265
    %v278 = vpack.c.b16 %v277, %v276
    %279 = vrot.lane.b32.xlu0 %v278, 64
    %v280 = vpop.permute.xlu0 %279
    %v283 = vsel %vm106, %v270, %v275
    %v285 = vsel %vm142, %v283, %v280
    %v286 = vld [vmem:[%s3] sm:$0xf]
    %v287 = vld [vmem:[%s3 + $0x4] sm:$0xf]
    %v288 = vld [vmem:[%s3 + $0x8] sm:$0xf]
    %v289 = vld [vmem:[%s3 + $0xc] sm:$0xf]
    %v290 = vld [vmem:[%s3 + $0x10] sm:$0xf]
    %v291 = vld [vmem:[%s3 + $0x14] sm:$0xf]
    %v292 = vld [vmem:[%s3 + $0x18] sm:$0xf]
    %v293 = vld [vmem:[%s3 + $0x1c] sm:$0xf]
    %v294 = vld [vmem:[%s3 + $0x20] sm:$0xf]
    %v295 = vld [vmem:[%s3 + $0x24] sm:$0xf]
    %v296 = vld [vmem:[%s3 + $0x28] sm:$0xf]
    %v297 = vld [vmem:[%s3 + $0x2c] sm:$0xf]
    %v310 = vunpack.c.l.b16 %v286
    %v311 = vunpack.c.l.b16 %v287
    %v312 = vunpack.c.l.b16 %v288
    %v313 = vunpack.c.l.b16 %v289
    %v314 = vunpack.c.l.b16 %v290
    %v315 = vunpack.c.l.b16 %v291
    %v316 = vunpack.c.l.b16 %v292
    %v317 = vunpack.c.l.b16 %v293
    %v318 = vunpack.c.l.b16 %v294
    %v319 = vunpack.c.l.b16 %v295
    %v320 = vunpack.c.l.b16 %v296
    %v321 = vunpack.c.l.b16 %v297
    %v322 = vpack.c.b16 %v311, %v310
    %v323 = vpack.c.b16 %v313, %v312
    %v324 = vpack.c.b16 %v315, %v314
    %v325 = vpack.c.b16 %v317, %v316
    %v326 = vpack.c.b16 %v319, %v318
    %v327 = vpack.c.b16 %v321, %v320
    %vm334 = vcmask 785408
    %v335 = vsel %vm334, %v285, 0
    %337 = vmatprep.subr.bf16.mxu0 0
    %338 = vmatpush1.bf16.msra.mxu0 %v322
    %339 = vmatprep.subr.bf16.mxu0 0
    %340 = vmatpush1.bf16.msra.mxu0 %v323
    %341 = vmatprep.subr.bf16.mxu0 0
    %342 = vmatpush1.bf16.msra.mxu0 %v324
    %343 = vmatprep.subr.bf16.mxu0 0
    %344 = vmatpush1.bf16.msra.mxu0 %v325
    %345 = vmatprep.subr.bf16.mxu0 0
    %346 = vmatpush1.bf16.msra.mxu0 %v326
    %347 = vmatprep.subr.bf16.mxu0 0
    %348 = vmatpush1.bf16.msra.mxu0 %v327
    %349 = vmatprep.subr.bf16.mxu0 0
    %350 = vmatpush1.bf16.msra.mxu0 0
    %351 = vmatprep.subr.bf16.mxu0 0
    %352 = vmatpush1.bf16.msra.mxu0 0
    %353 = vmatprep.subr.bf16.mxu0 0
    %354 = vmatpush1.bf16.msra.mxu0 0
    %355 = vmatprep.subr.bf16.mxu0 0
    %356 = vmatpush1.bf16.msra.mxu0 0
    %357 = vmatprep.subr.bf16.mxu0 0
    %358 = vmatpush1.bf16.msra.mxu0 0
    %359 = vmatprep.subr.bf16.mxu0 0
    %360 = vmatpush1.bf16.msra.mxu0 0
    %361 = vmatprep.subr.bf16.mxu0 0
    %362 = vmatpush1.bf16.msra.mxu0 0
    %363 = vmatprep.subr.bf16.mxu0 0
    %364 = vmatpush1.bf16.msra.mxu0 0
    %365 = vmatprep.subr.bf16.mxu0 0
    %366 = vmatpush1.bf16.msra.mxu0 0
    %367 = vmatprep.subr.bf16.mxu0 0
    %368 = vmatpush1.bf16.msra.mxu0 0
    %369 = vmatprep.mubr.bf16.mxu0 0
    %370 = vmatmul.mubr.bf16.gmra.mrb[0].mxu0 %v335
    %v371 = vpop.f32.mrb[0].mxu0
    %v372 = vadd.f32 0.0, %v371
    %v373 = vpop.f32.mrb[0].mxu0
    %v374 = vpop.f32.mrb[0].mxu0
    %v375 = vadd.f32 0.0, %v374
    %v376 = vpop.f32.mrb[0].mxu0
    %377 = vdwg.mxu0
    %vm378 = vcmp.lt.s32.totalorder %v59, 6
    %vm379 = vcmp.lt.s32.totalorder %v60, 6
    %v380 = vsel %vm378, 1, 0
    %v381 = vsel %vm379, 1, 0
    %vm382 = vcmp.eq.s32.totalorder %v380, 1
    %vm383 = vcmp.eq.s32.totalorder %v381, 1
    %v384 = vsel %vm382, %v372, -inf
    %v385 = vsel %vm383, %v375, -inf
    %v386 = vld [vmem:[%s4] sm:$0x1]
    %v387 = vsel %vm195, %v384, -inf
    %v388 = vrot.slane %v387, 4
    %v389 = vmax.f32 %v387, %v388
    %v390 = vrot.slane %v389, 2
    %v391 = vmax.f32 %v389, %v390
    %v392 = vrot.slane %v391, 1
    %v393 = vmax.f32 %v391, %v392
    %v394 = vadd.f32 %v393, %v386
    %v395 = vmax.f32 %v394, 0.0
    %397 = vrot.lane.b32.xlu0 %v395, 8
    %v398 = vpop.permute.xlu0 %397
    %vm400 = vcmask 122944
    %401 = vst.msk [vmem:[#allocation2] sm:$0x1] %vm400, %v398
    %v402 = vsel %vm195, %v385, -inf
    %v403 = vrot.slane %v402, 4
    %v404 = vmax.f32 %v402, %v403
    %v405 = vrot.slane %v404, 2
    %v406 = vmax.f32 %v404, %v405
    %v407 = vrot.slane %v406, 1
    %v408 = vmax.f32 %v406, %v407
    %v409 = vadd.f32 %v408, %v386
    %v410 = vmax.f32 %v409, 0.0
    %412 = vrot.lane.b32.xlu0 %v410, 8
    %v413 = vpop.permute.xlu0 %412
    %415 = vst.msk [vmem:[#allocation2 + $0x1] sm:$0x1] %vm400, %v413
    %v416 = vld [vmem:[%s0] sm:$0xf]
    %v417 = vld [vmem:[%s0 + $0x8] sm:$0xf]
    %v418 = vld [vmem:[%s0 + $0x4] sm:$0x1]
    %v419 = vld [vmem:[%s0 + $0xc] sm:$0x1]
    %v421 = vshrl.u32 %v416, 16
    %v423 = vrot.slane %v421, 4
    %v424 = vshll.u32 %v416, 16
    %v426 = vrot.slane %v424, 5
    %v427 = vor.u32 %v423, %v426
    %v428 = vrot.slane %v427, 4
    %v430 = vshll.u32 %v418, 16
    %v432 = vrot.slane %v430, 5
    %v433 = vsel %vm67, %v428, %v432
    %v435 = vshrl.u32 %v417, 16
    %v437 = vrot.slane %v435, 4
    %v438 = vshll.u32 %v417, 16
    %v440 = vrot.slane %v438, 5
    %v441 = vor.u32 %v437, %v440
    %v442 = vrot.slane %v441, 4
    %v444 = vshll.u32 %v419, 16
    %v446 = vrot.slane %v444, 5
    %v447 = vsel %vm67, %v442, %v446
    %v448 = vld [vmem:[%s0] sm:$0xe]
    %v449 = vld [vmem:[%s0 + $0x8] sm:$0xe]
    %v454 = vrot.slane %v448, 5
    %v455 = vrot.slane %v454, 4
    %v456 = vrot.slane %v418, 5
    %v457 = vsel %vm257, %v455, %v456
    %v458 = vrot.slane %v449, 5
    %v459 = vrot.slane %v458, 4
    %v460 = vrot.slane %v419, 5
    %v461 = vsel %vm257, %v459, %v460
    %v462 = vld [vmem:[%s0 + $0x4] sm:$0x3]
    %v463 = vld [vmem:[%s0 + $0xc] sm:$0x3]
    %vm464 = vsmask.f32 2304
    %vm465 = vsmask.f32 6416
    %vm466 = vmor %vm464, %vm465
    %v468 = vshrl.u32 %v448, 16
    %v470 = vrot.slane %v468, 5
    %v471 = vshll.u32 %v448, 16
    %v473 = vrot.slane %v471, 6
    %v474 = vor.u32 %v470, %v473
    %v475 = vrot.slane %v474, 4
    %v477 = vshrl.u32 %v462, 16
    %v479 = vrot.slane %v477, 5
    %v480 = vshll.u32 %v462, 16
    %v482 = vrot.slane %v480, 6
    %v483 = vor.u32 %v479, %v482
    %v484 = vsel %vm466, %v475, %v483
    %v486 = vshrl.u32 %v449, 16
    %v488 = vrot.slane %v486, 5
    %v489 = vshll.u32 %v449, 16
    %v491 = vrot.slane %v489, 6
    %v492 = vor.u32 %v488, %v491
    %v493 = vrot.slane %v492, 4
    %v495 = vshrl.u32 %v463, 16
    %v497 = vrot.slane %v495, 5
    %v498 = vshll.u32 %v463, 16
    %v500 = vrot.slane %v498, 6
    %v501 = vor.u32 %v497, %v500
    %v502 = vsel %vm466, %v493, %v501
    %v505 = vunpack.c.l.b16 %v416
    %v506 = vunpack.c.l.b16 %v417
    %v507 = vpack.c.b16 %v506, %v505
    %v508 = vunpack.c.l.b16 %v433
    %v509 = vunpack.c.l.b16 %v447
    %v510 = vpack.c.b16 %v509, %v508
    %511 = vrot.lane.b32.xlu0 %v510, 32
    %v512 = vpop.permute.xlu0 %511
    %v513 = vunpack.c.l.b16 %v457
    %v514 = vunpack.c.l.b16 %v461
    %v515 = vpack.c.b16 %v514, %v513
    %516 = vrot.lane.b32.xlu0 %v515, 64
    %v517 = vpop.permute.xlu0 %516
    %v518 = vunpack.c.l.b16 %v484
    %v519 = vunpack.c.l.b16 %v502
    %v520 = vpack.c.b16 %v519, %v518
    %521 = vrot.lane.b32.xlu0 %v520, 96
    %v522 = vpop.permute.xlu0 %521
    %v525 = vsel %vm106, %v507, %v512
    %v527 = vsel %vm142, %v525, %v517
    %v529 = vsel %vm334, %v527, %v522
    %v531 = vld [vmem:[%s5] sm:$0xf]
    %v532 = vld [vmem:[%s5 + $0x4] sm:$0xf]
    %v533 = vld [vmem:[%s5 + $0x8] sm:$0xf]
    %v534 = vld [vmem:[%s5 + $0xc] sm:$0xf]
    %v535 = vld [vmem:[%s5 + $0x10] sm:$0xf]
    %v536 = vld [vmem:[%s5 + $0x14] sm:$0xf]
    %v537 = vld [vmem:[%s5 + $0x18] sm:$0xf]
    %v538 = vld [vmem:[%s5 + $0x1c] sm:$0xf]
    %v539 = vld [vmem:[%s5 + $0x20] sm:$0xf]
    %v540 = vld [vmem:[%s5 + $0x24] sm:$0xf]
    %v541 = vld [vmem:[%s5 + $0x28] sm:$0xf]
    %v542 = vld [vmem:[%s5 + $0x2c] sm:$0xf]
    %v543 = vld [vmem:[%s5 + $0x30] sm:$0xf]
    %v544 = vld [vmem:[%s5 + $0x34] sm:$0xf]
    %v545 = vld [vmem:[%s5 + $0x38] sm:$0xf]
    %v546 = vld [vmem:[%s5 + $0x3c] sm:$0xf]
    %v563 = vunpack.c.l.b16 %v531
    %v564 = vunpack.c.l.b16 %v532
    %v565 = vunpack.c.l.b16 %v533
    %v566 = vunpack.c.l.b16 %v534
    %v567 = vunpack.c.l.b16 %v535
    %v568 = vunpack.c.l.b16 %v536
    %v569 = vunpack.c.l.b16 %v537
    %v570 = vunpack.c.l.b16 %v538
    %v571 = vunpack.c.l.b16 %v539
    %v572 = vunpack.c.l.b16 %v540
    %v573 = vunpack.c.l.b16 %v541
    %v574 = vunpack.c.l.b16 %v542
    %v575 = vunpack.c.l.b16 %v543
    %v576 = vunpack.c.l.b16 %v544
    %v577 = vunpack.c.l.b16 %v545
    %v578 = vunpack.c.l.b16 %v546
    %v579 = vpack.c.b16 %v564, %v563
    %v580 = vpack.c.b16 %v566, %v565
    %v581 = vpack.c.b16 %v568, %v567
    %v582 = vpack.c.b16 %v570, %v569
    %v583 = vpack.c.b16 %v572, %v571
    %v584 = vpack.c.b16 %v574, %v573
    %v585 = vpack.c.b16 %v576, %v575
    %v586 = vpack.c.b16 %v578, %v577
    %595 = vmatprep.subr.bf16.mxu0 0
    %596 = vmatpush1.bf16.msra.mxu0 %v579
    %597 = vmatprep.subr.bf16.mxu0 0
    %598 = vmatpush1.bf16.msra.mxu0 %v580
    %599 = vmatprep.subr.bf16.mxu0 0
    %600 = vmatpush1.bf16.msra.mxu0 %v581
    %601 = vmatprep.subr.bf16.mxu0 0
    %602 = vmatpush1.bf16.msra.mxu0 %v582
    %603 = vmatprep.subr.bf16.mxu0 0
    %604 = vmatpush1.bf16.msra.mxu0 %v583
    %605 = vmatprep.subr.bf16.mxu0 0
    %606 = vmatpush1.bf16.msra.mxu0 %v584
    %607 = vmatprep.subr.bf16.mxu0 0
    %608 = vmatpush1.bf16.msra.mxu0 %v585
    %609 = vmatprep.subr.bf16.mxu0 0
    %610 = vmatpush1.bf16.msra.mxu0 %v586
    %611 = vmatprep.subr.bf16.mxu0 0
    %612 = vmatpush1.bf16.msra.mxu0 0
    %613 = vmatprep.subr.bf16.mxu0 0
    %614 = vmatpush1.bf16.msra.mxu0 0
    %615 = vmatprep.subr.bf16.mxu0 0
    %616 = vmatpush1.bf16.msra.mxu0 0
    %617 = vmatprep.subr.bf16.mxu0 0
    %618 = vmatpush1.bf16.msra.mxu0 0
    %619 = vmatprep.subr.bf16.mxu0 0
    %620 = vmatpush1.bf16.msra.mxu0 0
    %621 = vmatprep.subr.bf16.mxu0 0
    %622 = vmatpush1.bf16.msra.mxu0 0
    %623 = vmatprep.subr.bf16.mxu0 0
    %624 = vmatpush1.bf16.msra.mxu0 0
    %625 = vmatprep.subr.bf16.mxu0 0
    %626 = vmatpush1.bf16.msra.mxu0 0
    %627 = vmatprep.mubr.bf16.mxu0 0
    %628 = vmatmul.mubr.bf16.gmra.mrb[0].mxu0 %v529
    %v629 = vpop.f32.mrb[0].mxu0
    %v630 = vadd.f32 0.0, %v629
    %v631 = vpop.f32.mrb[0].mxu0
    %v632 = vpop.f32.mrb[0].mxu0
    %v633 = vadd.f32 0.0, %v632
    %v634 = vpop.f32.mrb[0].mxu0
    %635 = vdwg.mxu0
    %vm636 = vcmp.lt.s32.totalorder %v59, 5
    %vm637 = vcmp.lt.s32.totalorder %v60, 5
    %v638 = vsel %vm636, 1, 0
    %v639 = vsel %vm637, 1, 0
    %vm640 = vcmp.eq.s32.totalorder %v638, 1
    %vm641 = vcmp.eq.s32.totalorder %v639, 1
    %v642 = vsel %vm640, %v630, -inf
    %v643 = vsel %vm641, %v633, -inf
    %v644 = vld [vmem:[%s6] sm:$0x1]
    %v645 = vsel %vm195, %v642, -inf
    %v646 = vrot.slane %v645, 4
    %v647 = vmax.f32 %v645, %v646
    %v648 = vrot.slane %v647, 2
    %v649 = vmax.f32 %v647, %v648
    %v650 = vrot.slane %v649, 1
    %v651 = vmax.f32 %v649, %v650
    %v652 = vadd.f32 %v651, %v644
    %v653 = vmax.f32 %v652, 0.0
    %655 = vrot.lane.b32.xlu0 %v653, 16
    %v656 = vpop.permute.xlu0 %655
    %vm658 = vcmask 188544
    %659 = vst.msk [vmem:[#allocation2] sm:$0x1] %vm658, %v656
    %v660 = vsel %vm195, %v643, -inf
    %v661 = vrot.slane %v660, 4
    %v662 = vmax.f32 %v660, %v661
    %v663 = vrot.slane %v662, 2
    %v664 = vmax.f32 %v662, %v663
    %v665 = vrot.slane %v664, 1
    %v666 = vmax.f32 %v664, %v665
    %v667 = vadd.f32 %v666, %v644
    %v668 = vmax.f32 %v667, 0.0
    %670 = vrot.lane.b32.xlu0 %v668, 16
    %v671 = vpop.permute.xlu0 %670
    %673 = vst.msk [vmem:[#allocation2 + $0x1] sm:$0x1] %vm658, %v671
    %v674 = vld [vmem:[#allocation2] sm:$0x3]
    %v675 = vld [vmem:[%s7] sm:$0xff]
    %v676 = vld [vmem:[%s7 + $0x8] sm:$0xff]
    %v677 = vld [vmem:[%s7 + $0x10] sm:$0xff]
    %v678 = vld [vmem:[%s8] sm:$0x1]
    %v680 = vlaneseq
    %v681 = vshrl.u32 %v680, 7
    %v682 = vsub.s32 0, %v681
    %v683 = vrot.slane %v678, %v682
    %vm685 = vcmask 195584
    %v687 = vsel %vm685, %v674, 0
    %689 = vmatprep.subr.mxu0 0.0
    %690 = vmatpush1.msra.mxu0 %v675
    %691 = vmatprep.subr.mxu0 0.0
    %692 = vmatpush1.msra.mxu0 %v676
    %693 = vmatprep.subr.mxu0 0.0
    %694 = vmatpush1.msra.mxu0 %v677
    %695 = vmatprep.subr.mxu0 0.0
    %696 = vmatpush1.msra.mxu0 0.0
    %697 = vmatprep.subr.mxu0 0.0
    %698 = vmatpush1.msra.mxu0 0.0
    %699 = vmatprep.subr.mxu0 0.0
    %700 = vmatpush1.msra.mxu0 0.0
    %701 = vmatprep.subr.mxu0 0.0
    %702 = vmatpush1.msra.mxu0 0.0
    %703 = vmatprep.subr.mxu0 0.0
    %704 = vmatpush1.msra.mxu0 0.0
    %705 = vmatprep.subr.mxu0 0.0
    %706 = vmatpush1.msra.mxu0 0.0
    %707 = vmatprep.subr.mxu0 0.0
    %708 = vmatpush1.msra.mxu0 0.0
    %709 = vmatprep.subr.mxu0 0.0
    %710 = vmatpush1.msra.mxu0 0.0
    %711 = vmatprep.subr.mxu0 0.0
    %712 = vmatpush1.msra.mxu0 0.0
    %713 = vmatprep.subr.mxu0 0.0
    %714 = vmatpush1.msra.mxu0 0.0
    %715 = vmatprep.subr.mxu0 0.0
    %716 = vmatpush1.msra.mxu0 0.0
    %717 = vmatprep.subr.mxu0 0.0
    %718 = vmatpush1.msra.mxu0 0.0
    %719 = vmatprep.subr.mxu0 0.0
    %720 = vmatpush1.msra.mxu0 0.0
    %721 = vmatprep.subr.mxu0 0.0
    %722 = vmatpush1.msra.mxu0 0.0
    %723 = vmatprep.subr.mxu0 0.0
    %724 = vmatpush1.msra.mxu0 0.0
    %725 = vmatprep.subr.mxu0 0.0
    %726 = vmatpush1.msra.mxu0 0.0
    %727 = vmatprep.subr.mxu0 0.0
    %728 = vmatpush1.msra.mxu0 0.0
    %729 = vmatprep.subr.mxu0 0.0
    %730 = vmatpush1.msra.mxu0 0.0
    %731 = vmatprep.subr.mxu0 0.0
    %732 = vmatpush1.msra.mxu0 0.0
    %733 = vmatprep.subr.mxu0 0.0
    %734 = vmatpush1.msra.mxu0 0.0
    %735 = vmatprep.subr.mxu0 0.0
    %736 = vmatpush1.msra.mxu0 0.0
    %737 = vmatprep.subr.mxu0 0.0
    %738 = vmatpush1.msra.mxu0 0.0
    %739 = vmatprep.subr.mxu0 0.0
    %740 = vmatpush1.msra.mxu0 0.0
    %741 = vmatprep.subr.mxu0 0.0
    %742 = vmatpush1.msra.mxu0 0.0
    %743 = vmatprep.subr.mxu0 0.0
    %744 = vmatpush1.msra.mxu0 0.0
    %745 = vmatprep.subr.mxu0 0.0
    %746 = vmatpush1.msra.mxu0 0.0
    %747 = vmatprep.subr.mxu0 0.0
    %748 = vmatpush1.msra.mxu0 0.0
    %749 = vmatprep.subr.mxu0 0.0
    %750 = vmatpush1.msra.mxu0 0.0
    %751 = vmatprep.subr.mxu0 0.0
    %752 = vmatpush1.msra.mxu0 0.0
    %753 = vmatprep.mubr.f32.mxu0 0.0
    %754 = vmatmul.mubr.f32.gmra.mrb[0].mxu0 %v687
    %v755 = vpop.f32.mrb[0].mxu0
    %v756 = vadd.f32 %v683, %v755
    %v757 = vpop.f32.mrb[0].mxu0
    %758 = vdwg.mxu0
    %vm759 = vcmask 33792
    %760 = vst.msk [vmem:[#allocation3] sm:$0x3] %vm759, %v756
    // Predicated region
    $region38: #{tpu_custom_call.1} parent=1 // pred_check
      _
    $region39: #{tpu_custom_call.1} parent=1 // pred_check_branch
      %762 = sbr.rel (0) target = $region41
    $region40: #{tpu_custom_call.1} parent=1 // pred_region
      %s764 = ssub.s32 32, 32
      %765 = vsyncadd [#allocation4], %s764
      %s767 = sshll.u32 [#allocation3], 4
      %s768 = int_to_ptr.vmem [resolvable:$true] %s767
      %770 = dma.vmem_to_hbm [thread:$0]  %s768, 32, %s9, [#allocation4]
    $region41: #{tpu_custom_call.1} parent=1 // pred_fallthru
      _
    // Predicated region
    $region42: #{tpu_custom_call.1} parent=1 // pred_check
      _
    $region43: #{tpu_custom_call.1} parent=1 // pred_check_branch
      %772 = sbr.rel (0) target = $region45
    $region44: #{tpu_custom_call.1} parent=1 // pred_region
      %773 = dma.done [#allocation4], 32
    $region45: #{tpu_custom_call.1} parent=1 // pred_fallthru
      _
    %774 = vsyncpa [#allocation4], 1

</llo_original>
